<compile_context>
chip_gen: v5e
topology: v5e:2x2
jax: 0.10.0
libtpu: 0.0.40
codegen_flags: <defaults>
</compile_context>

<pallas_src>
import functools

import jax
import jax.numpy as jnp
from jax.experimental import pallas as pl
from jax.experimental.pallas import tpu as pltpu


_LANE = 128
_VMEM_BUDGET_BYTES = 48 << 20   # per-step footprint target; fits v7x's 64 MiB


def _round_up(x, m):
    return -(-x // m) * m


def fc_encoder_kernel(x_ref, w1_ref, b1_ref, w2_ref, b2_ref, mu_ref, lv_ref):
    # fc1: cast x to the weight dtype so bf16 weights actually use the bf16
    # MXU path; accumulate in f32.
    x = x_ref[...].astype(w1_ref.dtype)
    h1 = jnp.dot(x, w1_ref[...], preferred_element_type=jnp.float32)
    # Bias + ReLU epilogue in f32 (v5e-safe), single cast for the second GEMM.
    h1 = jnp.maximum(h1 + b1_ref[...], 0.0).astype(w2_ref.dtype)
    # Fused [mu | logvar]: one GEMM against the concatenated [Hp, 2*Hp] weight.
    y = jnp.dot(h1, w2_ref[...], preferred_element_type=jnp.float32) + b2_ref[...]
    hp = mu_ref.shape[-1]                      # lane-aligned split (Hp % 128 == 0)
    mu_ref[...] = y[:, :hp].astype(mu_ref.dtype)
    lv_ref[...] = y[:, hp:].astype(lv_ref.dtype)


def prepare_params(w1, b1, wmu, bmu, wlv, blv, dtype=None):
    """One-time parameter prep (call at model-load time, NOT per forward).

    PyTorch layout [out, in] -> MXU layout [in, out]; mu/logvar fused into a
    single [Hp, 2*Hp] weight and [1, 2*Hp] bias; hidden dim zero-padded to a
    multiple of 128 lanes so output stores are unmasked. Optionally pre-cast
    the weights (e.g. jnp.bfloat16 on v6e/v7x); biases stay f32 so the
    epilogue adds remain f32.
    """
    w1 = jnp.asarray(w1); b1 = jnp.asarray(b1)
    wmu = jnp.asarray(wmu); bmu = jnp.asarray(bmu)
    wlv = jnp.asarray(wlv); blv = jnp.asarray(blv)
    H, _D = w1.shape
    Hp = _round_up(H, _LANE)
    ph = Hp - H

    w1t = jnp.pad(w1.T, ((0, 0), (0, ph)))                      # [D, Hp]
    b1r = jnp.pad(b1, (0, ph)).reshape(1, Hp)                   # [1, Hp]
    wmu_t = jnp.pad(wmu.T, ((0, ph), (0, ph)))                  # [Hp, Hp]
    wlv_t = jnp.pad(wlv.T, ((0, ph), (0, ph)))                  # [Hp, Hp]
    w2t = jnp.concatenate([wmu_t, wlv_t], axis=1)               # [Hp, 2*Hp]
    b2r = jnp.concatenate([jnp.pad(bmu, (0, ph)),
                           jnp.pad(blv, (0, ph))]).reshape(1, 2 * Hp)
    if dtype is not None:
        w1t = w1t.astype(dtype)
        w2t = w2t.astype(dtype)
    return w1t, b1r, w2t, b2r


def _vmem_bytes(bm, D, Hp, x_isz, w_isz, out_isz):
    h2p = 2 * Hp
    streamed = 2 * bm * D * x_isz + 2 * 2 * bm * Hp * out_isz   # x + (mu, lv), double-buffered
    resident = (D * Hp + Hp * h2p) * w_isz + (Hp + h2p) * 4     # weights/biases, Buffered(1)
    live = bm * Hp * 4 + bm * h2p * 4                           # f32 h1 / y intermediates
    return streamed + resident + live


def _pick_block_m(B, block_m, D, Hp, x_isz, w_isz, out_isz):
    if B <= 128:
        bm = min(B, block_m)        # single step: no per-step overhead for small batches
    else:
        # >= 2 grid steps so the "parallel" batch axis shards over v7x's 2 TCs.
        bm = min(block_m, _round_up(pl.cdiv(B, 2), 8))
    if bm < B:
        bm = _round_up(bm, 8)       # (8, 128) sublane constraint on tiled blocks
    # Shrink until the per-step footprint fits the cross-generation budget.
    while bm > 8 and _vmem_bytes(bm, D, Hp, x_isz, w_isz, out_isz) > _VMEM_BUDGET_BYTES:
        bm = max(8, _round_up(bm // 2, 8))
    return bm


@functools.partial(jax.jit, static_argnames=("hidden_size", "block_m"))
def fc_encoder(x, w1t, b1r, w2t, b2r, *, hidden_size, block_m=512):
    """x: [B, D]; params from prepare_params(). Returns (mu, logvar), each [B, hidden_size]."""
    B, D = x.shape
    Hp = w1t.shape[1]
    H2p = w2t.shape[1]
    x_isz = x.dtype.itemsize
    w_isz = w1t.dtype.itemsize

    bm = _pick_block_m(B, block_m, D, Hp, x_isz, w_isz, x_isz)
    grid = (pl.cdiv(B, bm),)

    est = _vmem_bytes(bm, D, Hp, x_isz, w_isz, x_isz)
    vmem_limit = int(min(max(2 * est, 32 << 20), 64 << 20))     # 64 MiB cap: safe on v7x

    flops = 2 * B * D * Hp + 2 * B * Hp * H2p
    bytes_accessed = (x.size * x_isz
                      + w1t.size * w_isz + w2t.size * w_isz
                      + b1r.size * 4 + b2r.size * 4
                      + 2 * B * Hp * x_isz)

    const = dict(pipeline_mode=pl.Buffered(buffer_count=1))     # resident: no double-buffer

    mu_p, lv_p = pl.pallas_call(
        fc_encoder_kernel,
        out_shape=(jax.ShapeDtypeStruct((B, Hp), x.dtype),
                   jax.ShapeDtypeStruct((B, Hp), x.dtype)),
        grid_spec=pl.GridSpec(
            grid=grid,
            in_specs=[
                pl.BlockSpec((bm, D), lambda i: (i, 0)),             # x tile (streamed)
                pl.BlockSpec((D, Hp), lambda i: (0, 0), **const),    # w1 (resident)
                pl.BlockSpec((1, Hp), lambda i: (0, 0), **const),    # b1
                pl.BlockSpec((Hp, H2p), lambda i: (0, 0), **const),  # [wmu|wlv] (resident)
                pl.BlockSpec((1, H2p), lambda i: (0, 0), **const),   # [bmu|blv]
            ],
            out_specs=(pl.BlockSpec((bm, Hp), lambda i: (i, 0)),     # mu
                       pl.BlockSpec((bm, Hp), lambda i: (i, 0))),    # logvar
        ),
        compiler_params=pltpu.CompilerParams(
            dimension_semantics=("parallel",),
            vmem_limit_bytes=vmem_limit),
        cost_estimate=pl.CostEstimate(flops=flops, transcendentals=0,
                                      bytes_accessed=bytes_accessed),
    )(x, w1t, b1r, w2t, b2r)

    if Hp != hidden_size:   # padding applied for thin hidden dims -> slice back
        mu_p = mu_p[:, :hidden_size]
        lv_p = lv_p[:, :hidden_size]
    return mu_p, lv_p


def _reference(x, w1, b1, wmu, bmu, wlv, blv):
    h1 = jnp.maximum(x @ w1.T + b1, 0.0)
    return h1 @ wmu.T + bmu, h1 @ wlv.T + blv


if __name__ == "__main__":
    # Small shapes consistent with the module: flattened weather features.
    batch, input_dim, hidden = 16, 32, 32

    key = jax.random.PRNGKey(0)
    kx, k1, k2, k3, k4, k5, k6 = jax.random.split(key, 7)

    x = jax.random.normal(kx, (batch, input_dim), dtype=jnp.float32)

    # Deterministic parameter init (synthetic; not a checkpoint load).
    w1  = jax.random.normal(k1, (hidden, input_dim), dtype=jnp.float32) * 0.1
    b1  = jax.random.normal(k2, (hidden,),           dtype=jnp.float32) * 0.1
    wmu = jax.random.normal(k3, (hidden, hidden),    dtype=jnp.float32) * 0.1
    bmu = jax.random.normal(k4, (hidden,),           dtype=jnp.float32) * 0.1
    wlv = jax.random.normal(k5, (hidden, hidden),    dtype=jnp.float32) * 0.1
    blv = jax.random.normal(k6, (hidden,),           dtype=jnp.float32) * 0.1

    mu_ref, lv_ref = _reference(x, w1, b1, wmu, bmu, wlv, blv)

    # f32 weights: tight numerical check against the f32 reference.
    p32 = prepare_params(w1, b1, wmu, bmu, wlv, blv)
    mu, logvar = fc_encoder(x, *p32, hidden_size=hidden)
    jax.block_until_ready((mu, logvar))
    assert mu.shape == (batch, hidden) and logvar.shape == (batch, hidden)
    assert jnp.allclose(mu, mu_ref, atol=1e-5, rtol=1e-5)
    assert jnp.allclose(logvar, lv_ref, atol=1e-5, rtol=1e-5)

    # bf16 weights: exercises the in-kernel x cast -> bf16 MXU path (f32 accum).
    pbf = prepare_params(w1, b1, wmu, bmu, wlv, blv, dtype=jnp.bfloat16)
    mu_b, lv_b = fc_encoder(x, *pbf, hidden_size=hidden)
    jax.block_until_ready((mu_b, lv_b))
    assert mu_b.shape == (batch, hidden) and lv_b.shape == (batch, hidden)
    assert jnp.allclose(mu_b, mu_ref, atol=5e-2, rtol=5e-2)
    assert jnp.allclose(lv_b, lv_ref, atol=5e-2, rtol=5e-2)

    print("KERNEL_OK")
</pallas_src>

<mosaic_0001>
module attributes {stable_mosaic.version = 11 : i64} {
  func.func @fc_encoder_kernel(%arg0: i32, %arg1: memref<16x32xf32, #tpu.memory_space<vmem>>, %arg2: memref<32x128xf32, #tpu.memory_space<vmem>>, %arg3: memref<1x128xf32, #tpu.memory_space<vmem>>, %arg4: memref<128x256xf32, #tpu.memory_space<vmem>>, %arg5: memref<1x256xf32, #tpu.memory_space<vmem>>, %arg6: memref<16x128xf32, #tpu.memory_space<vmem>>, %arg7: memref<16x128xf32, #tpu.memory_space<vmem>>) attributes {dimension_semantics = [#tpu.dimension_semantics<parallel>], iteration_bounds = array<i64: 1>, scalar_prefetch = 0 : i64, scratch_operands = 0 : i64, tpu.core_type = #tpu.core_type<tc>, window_params = [{transform_indices = @transform_0, window_bounds = array<i64: 16, 32>}, {pipeline_mode = #tpu.pipeline_mode<synchronous>, transform_indices = @transform_1, window_bounds = array<i64: 32, 128>}, {pipeline_mode = #tpu.pipeline_mode<synchronous>, transform_indices = @transform_2, window_bounds = array<i64: 1, 128>}, {pipeline_mode = #tpu.pipeline_mode<synchronous>, transform_indices = @transform_3, window_bounds = array<i64: 128, 256>}, {pipeline_mode = #tpu.pipeline_mode<synchronous>, transform_indices = @transform_4, window_bounds = array<i64: 1, 256>}, {transform_indices = @transform_5, window_bounds = array<i64: 16, 128>}, {transform_indices = @transform_6, window_bounds = array<i64: 16, 128>}]} {
    %c0 = arith.constant 0 : index
    %c0_0 = arith.constant 0 : index
    %0 = vector.load %arg1[%c0, %c0_0] : memref<16x32xf32, #tpu.memory_space<vmem>>, vector<16x32xf32>
    %c0_1 = arith.constant 0 : index
    %c0_2 = arith.constant 0 : index
    %1 = vector.load %arg2[%c0_1, %c0_2] : memref<32x128xf32, #tpu.memory_space<vmem>>, vector<32x128xf32>
    %cst = arith.constant dense<0.000000e+00> : vector<16x128xf32>
    %2 = tpu.matmul %0, %1, %cst {dimension_numbers = #tpu.dot_dimension_numbers<[1], [0], [0], [1], [0, 0, 1, 1], [], []>} : vector<16x32xf32>, vector<32x128xf32>, vector<16x128xf32> -> vector<16x128xf32>
    %c0_3 = arith.constant 0 : index
    %c0_4 = arith.constant 0 : index
    %3 = vector.load %arg3[%c0_3, %c0_4] : memref<1x128xf32, #tpu.memory_space<vmem>>, vector<1x128xf32>
    %4 = vector.broadcast %3 : vector<1x128xf32> to vector<16x128xf32>
    %5 = arith.addf %2, %4 : vector<16x128xf32>
    %cst_5 = arith.constant 0.000000e+00 : f32
    %6 = vector.broadcast %cst_5 : f32 to vector<16x128xf32>
    %7 = arith.maximumf %5, %6 : vector<16x128xf32>
    %c0_6 = arith.constant 0 : index
    %c0_7 = arith.constant 0 : index
    %8 = vector.load %arg4[%c0_6, %c0_7] : memref<128x256xf32, #tpu.memory_space<vmem>>, vector<128x256xf32>
    %cst_8 = arith.constant dense<0.000000e+00> : vector<16x256xf32>
    %9 = tpu.matmul %7, %8, %cst_8 {dimension_numbers = #tpu.dot_dimension_numbers<[1], [0], [0], [1], [0, 0, 1, 1], [], []>} : vector<16x128xf32>, vector<128x256xf32>, vector<16x256xf32> -> vector<16x256xf32>
    %c0_9 = arith.constant 0 : index
    %c0_10 = arith.constant 0 : index
    %10 = vector.load %arg5[%c0_9, %c0_10] : memref<1x256xf32, #tpu.memory_space<vmem>>, vector<1x256xf32>
    %11 = vector.broadcast %10 : vector<1x256xf32> to vector<16x256xf32>
    %12 = arith.addf %9, %11 : vector<16x256xf32>
    %13 = vector.extract_strided_slice %12 {offsets = [0, 0], sizes = [16, 128], strides = [1, 1]} : vector<16x256xf32> to vector<16x128xf32>
    %c0_11 = arith.constant 0 : index
    %c0_12 = arith.constant 0 : index
    %14 = vector.load %arg6[%c0_11, %c0_12] : memref<16x128xf32, #tpu.memory_space<vmem>>, vector<16x128xf32>
    tpu.vector_store %arg6[%c0_11, %c0_12], %13 {strides = array<i32>} : memref<16x128xf32, #tpu.memory_space<vmem>>, vector<16x128xf32>,
    %15 = vector.extract_strided_slice %12 {offsets = [0, 128], sizes = [16, 128], strides = [1, 1]} : vector<16x256xf32> to vector<16x128xf32>
    %c0_13 = arith.constant 0 : index
    %c0_14 = arith.constant 0 : index
    %16 = vector.load %arg7[%c0_13, %c0_14] : memref<16x128xf32, #tpu.memory_space<vmem>>, vector<16x128xf32>
    tpu.vector_store %arg7[%c0_13, %c0_14], %15 {strides = array<i32>} : memref<16x128xf32, #tpu.memory_space<vmem>>, vector<16x128xf32>,
    return
  }
  func.func @transform_0(%arg0: i32) -> (i32, i32) {
    %c0_i32 = arith.constant 0 : i32
    %c0_i32_0 = arith.constant 0 : i32
    return %arg0, %c0_i32 : i32, i32
  }
  func.func @transform_1(%arg0: i32) -> (i32, i32) {
    %c0_i32 = arith.constant 0 : i32
    %c0_i32_0 = arith.constant 0 : i32
    %c0_i32_1 = arith.constant 0 : i32
    return %c0_i32, %c0_i32_0 : i32, i32
  }
  func.func @transform_2(%arg0: i32) -> (i32, i32) {
    %c0_i32 = arith.constant 0 : i32
    %c0_i32_0 = arith.constant 0 : i32
    %c0_i32_1 = arith.constant 0 : i32
    return %c0_i32, %c0_i32_0 : i32, i32
  }
  func.func @transform_3(%arg0: i32) -> (i32, i32) {
    %c0_i32 = arith.constant 0 : i32
    %c0_i32_0 = arith.constant 0 : i32
    %c0_i32_1 = arith.constant 0 : i32
    return %c0_i32, %c0_i32_0 : i32, i32
  }
  func.func @transform_4(%arg0: i32) -> (i32, i32) {
    %c0_i32 = arith.constant 0 : i32
    %c0_i32_0 = arith.constant 0 : i32
    %c0_i32_1 = arith.constant 0 : i32
    return %c0_i32, %c0_i32_0 : i32, i32
  }
  func.func @transform_5(%arg0: i32) -> (i32, i32) {
    %c0_i32 = arith.constant 0 : i32
    %c0_i32_0 = arith.constant 0 : i32
    return %arg0, %c0_i32 : i32, i32
  }
  func.func @transform_6(%arg0: i32) -> (i32, i32) {
    %c0_i32 = arith.constant 0 : i32
    %c0_i32_0 = arith.constant 0 : i32
    return %arg0, %c0_i32 : i32, i32
  }
}

</mosaic_0001>

<llo_original>
// kernel: fc_encoder.1
$region0: #{fc_encoder.1}
  #allocation0 [shape = 'u32[]', space=smem, size = 0x4, offset = 0x4, fixed_abs, tag = 'smem constant byte address 0x4 - core index']
  #allocation1 [shape = 'u32[72,128]{1,0:T(1,128)}', space=vmem, size = 0x9000, scoped, tag = 'internal scratch']
  %s0 = inlined_call_operand.hbm [shape: f32[16,32], index: 0, kind: input, shape index: {}]
  %s1 = inlined_call_operand.hbm [shape: f32[32,128], index: 1, kind: input, shape index: {}]
  %s2 = inlined_call_operand.vmem [shape: f32[1,128], index: 2, kind: input, shape index: {}]
  %s3 = inlined_call_operand.hbm [shape: f32[128,256], index: 3, kind: input, shape index: {}]
  %s4 = inlined_call_operand.vmem [shape: f32[1,256], index: 4, kind: input, shape index: {}]
  %s5 = inlined_call_operand.hbm [shape: f32[16,128], index: 5, kind: output, shape index: {0}]
  %s6 = inlined_call_operand.hbm [shape: f32[16,128], index: 6, kind: output, shape index: {1}]
  %7 = xla_tuple %s5, %s6
  %s8 = sld [smem:[#allocation0]]
  $region50: #{fc_encoder.1} parent=0
    _
  %s10 = ssub.s32 1, %s8
  %s11 = scalar_select 0, %s10, %s8
  $region1: #{fc_encoder.1} parent=0
    #allocation2 [shape = 'u8[8192]{0}', space=vmem, size = 0x2000, scoped, tag = 'input window, operand 0, single buffered']
    #allocation3 [shape = 's32[1]{0}', space=sflag, size = 0x4, scoped, tag = 'scoped memory for fc_encoder.1']
    #allocation4 [shape = 's32[1]{0}', space=sflag, size = 0x4, scoped, tag = 'scoped memory for fc_encoder.1']
    #allocation5 [shape = 'u8[16384]{0}', space=vmem, size = 0x4000, scoped, tag = 'input window, operand 1, single buffered']
    #allocation6 [shape = 's32[1]{0}', space=sflag, size = 0x4, scoped, tag = 'scoped memory for fc_encoder.1']
    #allocation7 [shape = 'u8[131072]{0}', space=vmem, size = 0x20000, scoped, tag = 'input window, operand 3, single buffered']
    #allocation8 [shape = 'u8[8192]{0}', space=vmem, size = 0x2000, scoped, tag = 'output window, operand 0, single buffered']
    #allocation9 [shape = 'u8[8192]{0}', space=vmem, size = 0x2000, scoped, tag = 'output window, operand 1, single buffered']
    #allocation10 [shape = 's32[1]{0}', space=sflag, size = 0x4, scoped, tag = 'scoped memory for fc_encoder.1']
    %12 = vsyncpa [#allocation3], 0
    %13 = vsyncpa [#allocation6], 0
    %14 = vsyncpa [#allocation4], 0
    %15 = vsyncpa [#allocation10], 0
    // Predicated region
    $region2: #{fc_encoder.1} parent=1 // pred_check
      _
    $region3: #{fc_encoder.1} parent=1 // pred_check_branch
      %17 = sbr.rel (0) target = $region5
    $region4: #{fc_encoder.1} parent=1 // pred_region
      %19 = vsyncadd [#allocation3], 0
      %s20 = sshll.u32 %s0, 4
      %s21 = int_to_ptr.hbm [resolvable:$true] %s20
      %s22 = sshll.u32 [#allocation2], 4
      %s23 = int_to_ptr.vmem [resolvable:$true] %s22
      %28 = dma.hbm_to_vmem [thread:$0]  %s21, 256, %s23, [#allocation3], 128, 128, 8
    $region5: #{fc_encoder.1} parent=1 // pred_fallthru
      _
    // Predicated region
    $region6: #{fc_encoder.1} parent=1 // pred_check
      _
    $region7: #{fc_encoder.1} parent=1 // pred_check_branch
      %30 = sbr.rel (0) target = $region9
    $region8: #{fc_encoder.1} parent=1 // pred_region
      %32 = vsyncadd [#allocation6], 0
      %s33 = sshll.u32 %s1, 4
      %s34 = int_to_ptr.hbm [resolvable:$true] %s33
      %s35 = sshll.u32 [#allocation5], 4
      %s36 = int_to_ptr.vmem [resolvable:$true] %s35
      %41 = dma.hbm_to_vmem [thread:$0]  %s34, 512, %s36, [#allocation6], 128, 128, 8
    $region9: #{fc_encoder.1} parent=1 // pred_fallthru
      _
    // Predicated region
    $region10: #{fc_encoder.1} parent=1 // pred_check
      _
    $region11: #{fc_encoder.1} parent=1 // pred_check_branch
      %43 = sbr.rel (0) target = $region13
    $region12: #{fc_encoder.1} parent=1 // pred_region
      _
    $region13: #{fc_encoder.1} parent=1 // pred_fallthru
      _
    // Predicated region
    $region14: #{fc_encoder.1} parent=1 // pred_check
      _
    $region15: #{fc_encoder.1} parent=1 // pred_check_branch
      %45 = sbr.rel (0) target = $region17
    $region16: #{fc_encoder.1} parent=1 // pred_region
      %47 = vsyncadd [#allocation6], 0
      %s48 = sshll.u32 %s3, 4
      %s49 = int_to_ptr.hbm [resolvable:$true] %s48
      %s50 = sshll.u32 [#allocation7], 4
      %s51 = int_to_ptr.vmem [resolvable:$true] %s50
      %56 = dma.hbm_to_vmem [thread:$0]  %s49, 4096, %s51, [#allocation6], 256, 256, 16
    $region17: #{fc_encoder.1} parent=1 // pred_fallthru
      _
    // Predicated region
    $region18: #{fc_encoder.1} parent=1 // pred_check
      _
    $region19: #{fc_encoder.1} parent=1 // pred_check_branch
      %58 = sbr.rel (0) target = $region21
    $region20: #{fc_encoder.1} parent=1 // pred_region
      _
    $region21: #{fc_encoder.1} parent=1 // pred_fallthru
      _
    // Predicated region
    $region22: #{fc_encoder.1} parent=1 // pred_check
      _
    $region23: #{fc_encoder.1} parent=1 // pred_check_branch
      %60 = sbr.rel (0) target = $region25
    $region24: #{fc_encoder.1} parent=1 // pred_region
      %62 = dma.done [#allocation3], 256
    $region25: #{fc_encoder.1} parent=1 // pred_fallthru
      _
    // Predicated region
    $region26: #{fc_encoder.1} parent=1 // pred_check
      _
    $region27: #{fc_encoder.1} parent=1 // pred_check_branch
      %64 = sbr.rel (0) target = $region29
    $region28: #{fc_encoder.1} parent=1 // pred_region
      %66 = dma.done [#allocation6], 512
    $region29: #{fc_encoder.1} parent=1 // pred_fallthru
      _
    // Predicated region
    $region30: #{fc_encoder.1} parent=1 // pred_check
      _
    $region31: #{fc_encoder.1} parent=1 // pred_check_branch
      %68 = sbr.rel (0) target = $region33
    $region32: #{fc_encoder.1} parent=1 // pred_region
      %70 = dma.done [#allocation6], 4096
    $region33: #{fc_encoder.1} parent=1 // pred_fallthru
      _
    %v71 = vld [vmem:[#allocation2] sm:$0xff]
    %v72 = vld [vmem:[#allocation2 + $0x8] sm:$0xff]
    %v73 = vld [vmem:[#allocation5] sm:$0xff]
    %v74 = vld [vmem:[#allocation5 + $0x8] sm:$0xff]
    %v75 = vld [vmem:[#allocation5 + $0x10] sm:$0xff]
    %v76 = vld [vmem:[#allocation5 + $0x18] sm:$0xff]
    %v77 = vld [vmem:[%s2] sm:$0x1]
    %v79 = vperm.slane %v77, 0
    %vm81 = vcmask 261120
    %v83 = vsel %vm81, %v71, 0
    %v86 = vsel %vm81, %v72, 0
    %88 = vmatpush.msra.mxu0 0.0
    %89 = vmatpush.msra.mxu0 0.0
    %90 = vmatpush.msra.mxu0 0.0
    %91 = vmatpush.msra.mxu0 0.0
    %92 = vmatpush.msra.mxu0 0.0
    %93 = vmatpush.msra.mxu0 0.0
    %94 = vmatpush.msra.mxu0 0.0
    %95 = vmatpush.msra.mxu0 0.0
    %96 = vmatpush.msra.mxu0 0.0
    %97 = vmatpush.msra.mxu0 0.0
    %98 = vmatpush.msra.mxu0 0.0
    %99 = vmatpush.msra.mxu0 0.0
    %100 = vmatpush.msra.mxu0 %v76
    %101 = vmatpush.msra.mxu0 %v75
    %102 = vmatpush.msra.mxu0 %v74
    %103 = vmatpush.msra.mxu0 %v73
    %104 = vmatmul.f32.gmra.mxu0 %v83
    %v105 = vpop.f32.mrf.mxu0
    %v106 = vadd.f32 %v79, %v105
    %107 = vmatmul.f32.gmra.mxu0 %v86
    %v108 = vpop.f32.mrf.mxu0
    %v109 = vadd.f32 %v79, %v108
    %110 = vdwg.mxu0
    %v111 = vmax.f32 %v106, 0.0
    %v112 = vmax.f32 %v109, 0.0
    %v113 = vld [vmem:[#allocation7] sm:$0xff]
    %v114 = vld [vmem:[#allocation7 + $0x8] sm:$0xff]
    %v115 = vld [vmem:[#allocation7 + $0x10] sm:$0xff]
    %v116 = vld [vmem:[#allocation7 + $0x18] sm:$0xff]
    %v117 = vld [vmem:[#allocation7 + $0x20] sm:$0xff]
    %v118 = vld [vmem:[#allocation7 + $0x28] sm:$0xff]
    %v119 = vld [vmem:[#allocation7 + $0x30] sm:$0xff]
    %v120 = vld [vmem:[#allocation7 + $0x38] sm:$0xff]
    %v121 = vld [vmem:[#allocation7 + $0x40] sm:$0xff]
    %v122 = vld [vmem:[#allocation7 + $0x48] sm:$0xff]
    %v123 = vld [vmem:[#allocation7 + $0x50] sm:$0xff]
    %v124 = vld [vmem:[#allocation7 + $0x58] sm:$0xff]
    %v125 = vld [vmem:[#allocation7 + $0x60] sm:$0xff]
    %v126 = vld [vmem:[#allocation7 + $0x68] sm:$0xff]
    %v127 = vld [vmem:[#allocation7 + $0x70] sm:$0xff]
    %v128 = vld [vmem:[#allocation7 + $0x78] sm:$0xff]
    %v129 = vld [vmem:[#allocation7 + $0x80] sm:$0xff]
    %v130 = vld [vmem:[#allocation7 + $0x88] sm:$0xff]
    %v131 = vld [vmem:[#allocation7 + $0x90] sm:$0xff]
    %v132 = vld [vmem:[#allocation7 + $0x98] sm:$0xff]
    %v133 = vld [vmem:[#allocation7 + $0xa0] sm:$0xff]
    %v134 = vld [vmem:[#allocation7 + $0xa8] sm:$0xff]
    %v135 = vld [vmem:[#allocation7 + $0xb0] sm:$0xff]
    %v136 = vld [vmem:[#allocation7 + $0xb8] sm:$0xff]
    %v137 = vld [vmem:[#allocation7 + $0xc0] sm:$0xff]
    %v138 = vld [vmem:[#allocation7 + $0xc8] sm:$0xff]
    %v139 = vld [vmem:[#allocation7 + $0xd0] sm:$0xff]
    %v140 = vld [vmem:[#allocation7 + $0xd8] sm:$0xff]
    %v141 = vld [vmem:[#allocation7 + $0xe0] sm:$0xff]
    %v142 = vld [vmem:[#allocation7 + $0xe8] sm:$0xff]
    %v143 = vld [vmem:[#allocation7 + $0xf0] sm:$0xff]
    %v144 = vld [vmem:[#allocation7 + $0xf8] sm:$0xff]
    %v145 = vld [vmem:[%s4] sm:$0x3]
    %v147 = vperm.slane %v145, 0
    %v148 = vperm.slane %v145, 1
    %151 = vmatpush.msra.mxu0 %v143
    %152 = vmatpush.msra.mxu0 %v141
    %153 = vmatpush.msra.mxu0 %v139
    %154 = vmatpush.msra.mxu0 %v137
    %155 = vmatpush.msra.mxu0 %v135
    %156 = vmatpush.msra.mxu0 %v133
    %157 = vmatpush.msra.mxu0 %v131
    %158 = vmatpush.msra.mxu0 %v129
    %159 = vmatpush.msra.mxu0 %v127
    %160 = vmatpush.msra.mxu0 %v125
    %161 = vmatpush.msra.mxu0 %v123
    %162 = vmatpush.msra.mxu0 %v121
    %163 = vmatpush.msra.mxu0 %v119
    %164 = vmatpush.msra.mxu0 %v117
    %165 = vmatpush.msra.mxu0 %v115
    %166 = vmatpush.msra.mxu0 %v113
    %167 = vmatmul.f32.gmra.mxu0 %v111
    %v168 = vpop.f32.mrf.mxu0
    %v169 = vadd.f32 %v147, %v168
    %170 = vmatmul.f32.gmra.mxu0 %v112
    %v171 = vpop.f32.mrf.mxu0
    %v172 = vadd.f32 %v147, %v171
    %173 = vdwg.mxu0
    %174 = vmatpush.msra.mxu0 %v144
    %175 = vmatpush.msra.mxu0 %v142
    %176 = vmatpush.msra.mxu0 %v140
    %177 = vmatpush.msra.mxu0 %v138
    %178 = vmatpush.msra.mxu0 %v136
    %179 = vmatpush.msra.mxu0 %v134
    %180 = vmatpush.msra.mxu0 %v132
    %181 = vmatpush.msra.mxu0 %v130
    %182 = vmatpush.msra.mxu0 %v128
    %183 = vmatpush.msra.mxu0 %v126
    %184 = vmatpush.msra.mxu0 %v124
    %185 = vmatpush.msra.mxu0 %v122
    %186 = vmatpush.msra.mxu0 %v120
    %187 = vmatpush.msra.mxu0 %v118
    %188 = vmatpush.msra.mxu0 %v116
    %189 = vmatpush.msra.mxu0 %v114
    %190 = vmatmul.f32.gmra.mxu0 %v111
    %v191 = vpop.f32.mrf.mxu0
    %v192 = vadd.f32 %v148, %v191
    %193 = vmatmul.f32.gmra.mxu0 %v112
    %v194 = vpop.f32.mrf.mxu0
    %v195 = vadd.f32 %v148, %v194
    %196 = vdwg.mxu0
    %197 = vst [vmem:[#allocation8] sm:$0xff] %v169
    %198 = vst [vmem:[#allocation8 + $0x8] sm:$0xff] %v172
    %199 = vst [vmem:[#allocation9] sm:$0xff] %v192
    %200 = vst [vmem:[#allocation9 + $0x8] sm:$0xff] %v195
    // Predicated region
    $region34: #{fc_encoder.1} parent=1 // pred_check
      _
    $region35: #{fc_encoder.1} parent=1 // pred_check_branch
      %202 = sbr.rel (0) target = $region37
    $region36: #{fc_encoder.1} parent=1 // pred_region
      %204 = vsyncadd [#allocation4], 0
      %s205 = sshll.u32 [#allocation8], 4
      %s206 = int_to_ptr.vmem [resolvable:$true] %s205
      %s207 = sshll.u32 %s5, 4
      %s208 = int_to_ptr.hbm [resolvable:$true] %s207
      %213 = dma.vmem_to_hbm [thread:$0]  %s206, 256, %s208, [#allocation4], 128, 128, 8
    $region37: #{fc_encoder.1} parent=1 // pred_fallthru
      _
    // Predicated region
    $region38: #{fc_encoder.1} parent=1 // pred_check
      _
    $region39: #{fc_encoder.1} parent=1 // pred_check_branch
      %215 = sbr.rel (0) target = $region41
    $region40: #{fc_encoder.1} parent=1 // pred_region
      %217 = vsyncadd [#allocation10], 0
      %s218 = sshll.u32 [#allocation9], 4
      %s219 = int_to_ptr.vmem [resolvable:$true] %s218
      %s220 = sshll.u32 %s6, 4
      %s221 = int_to_ptr.hbm [resolvable:$true] %s220
      %226 = dma.vmem_to_hbm [thread:$0]  %s219, 256, %s221, [#allocation10], 128, 128, 8
    $region41: #{fc_encoder.1} parent=1 // pred_fallthru
      _
    // Predicated region
    $region42: #{fc_encoder.1} parent=1 // pred_check
      _
    $region43: #{fc_encoder.1} parent=1 // pred_check_branch
      %228 = sbr.rel (0) target = $region45
    $region44: #{fc_encoder.1} parent=1 // pred_region
      %230 = dma.done [#allocation4], 256
    $region45: #{fc_encoder.1} parent=1 // pred_fallthru
      _
    // Predicated region
    $region46: #{fc_encoder.1} parent=1 // pred_check
      _
    $region47: #{fc_encoder.1} parent=1 // pred_check_branch
      %232 = sbr.rel (0) target = $region49
    $region48: #{fc_encoder.1} parent=1 // pred_region
      %234 = dma.done [#allocation10], 256
    $region49: #{fc_encoder.1} parent=1 // pred_fallthru
      _
    %235 = vsyncpa [#allocation3], 1
    %236 = vsyncpa [#allocation6], 1
    %237 = vsyncpa [#allocation4], 1
    %238 = vsyncpa [#allocation10], 1

</llo_original>
